<compile_context>
chip_gen: v6e
topology: v6e:2x2x1
jax: 0.10.0
libtpu: 0.0.40
codegen_flags: <defaults>
</compile_context>

<pallas_src>
import functools
import math

import jax
import jax.numpy as jnp
from jax.experimental import pallas as pl
from jax.experimental.pallas import tpu as pltpu


def _round_up(x, m):
    return ((x + m - 1) // m) * m


def _cdiv(a, b):
    return (a + b - 1) // b


def _vmem_budget_bytes():
    """Physical per-core VMEM minus headroom (generation-aware; v7x has only 64 MiB/TC)."""
    cap = 64 * 1024 * 1024  # conservative default if query fails
    try:
        info = pltpu.get_tpu_info()
        cap = int(getattr(info, "vmem_capacity_bytes", cap))
    except Exception:
        pass
    return max(16 * 1024 * 1024, cap - 12 * 1024 * 1024)


def _fused_mlp_kernel(z_ref, *refs, num_linear, final_sigmoid):
    """One batch tile through `num_linear` fused Linear layers.

    refs = (w0, b0, w1, b1, ..., w_{L-1}, b_{L-1}, o_ref)
      z_ref : bf16 [TB, F_in]
      w_i   : bf16 [Fin_i, Fout_pad_i]   (VMEM-resident across the batch grid)
      b_i   : f32  [1, Fout_pad_i]
      o_ref : bf16/f32 [TB, F_out_pad]
    All matmuls are bf16 x bf16 -> f32 on the MXU; bias / ReLU / sigmoid in f32.
    """
    o_ref = refs[-1]
    x = z_ref[...].astype(jnp.bfloat16)
    y = None
    for li in range(num_linear):
        w = refs[2 * li][...]
        b = refs[2 * li + 1][...]
        y = jnp.dot(x, w, preferred_element_type=jnp.float32) + b
        if li < num_linear - 1:
            x = jnp.maximum(y, 0.0).astype(jnp.bfloat16)
    if final_sigmoid:
        o_ref[...] = jax.nn.sigmoid(y).astype(o_ref.dtype)
    else:
        # Non-final layer group: this layer is a hidden layer -> ReLU, store bf16 activation.
        o_ref[...] = jnp.maximum(y, 0.0).astype(o_ref.dtype)


def _fused_mlp_group(z_pad, w_list, b_list, *, tb, final_sigmoid, out_dtype, vmem_budget):
    """z_pad: bf16 [B_pad, F_in]; w_list[i]: bf16 [Fin_i, Fout_pad_i]; b_list[i]: f32 [1, Fout_pad_i]."""
    b_total, f_in = z_pad.shape
    f_out = w_list[-1].shape[1]
    num_linear = len(w_list)
    grid = (b_total // tb,)
    out_itemsize = jnp.dtype(out_dtype).itemsize

    weight_bytes = sum(w.size * w.dtype.itemsize for w in w_list) + \
                   sum(b.size * b.dtype.itemsize for b in b_list)
    widest = max(w.shape[1] for w in w_list)
    act_bytes = (2 * tb * f_in * z_pad.dtype.itemsize        # double-buffered input tile
                 + 2 * tb * f_out * out_itemsize             # double-buffered output tile
                 + 2 * tb * widest * 4)                      # widest f32 intermediate
    vmem_limit = int(min(vmem_budget,
                         max(32 * 1024 * 1024, weight_bytes + act_bytes + (4 << 20))))

    flops = 2 * b_total * sum(w.shape[0] * w.shape[1] for w in w_list)
    bytes_accessed = (z_pad.size * z_pad.dtype.itemsize
                      + weight_bytes
                      + b_total * f_out * out_itemsize)
    cost = pl.CostEstimate(flops=flops,
                           transcendentals=(b_total * f_out if final_sigmoid else 0),
                           bytes_accessed=bytes_accessed)

    kernel = functools.partial(_fused_mlp_kernel,
                               num_linear=num_linear, final_sigmoid=final_sigmoid)
    args = [z_pad]
    for w, b in zip(w_list, b_list):
        args.extend([w, b])

    def build(single_buffer_weights):
        in_specs = [pl.BlockSpec((tb, f_in), lambda i: (i, 0))]
        for w, b in zip(w_list, b_list):
            if single_buffer_weights:
                # Constant index_map -> loaded once; single buffer saves half the weight VMEM.
                in_specs.append(pl.BlockSpec(w.shape, lambda i: (0, 0),
                                             pipeline_mode=pl.Buffered(1)))
                in_specs.append(pl.BlockSpec(b.shape, lambda i: (0, 0),
                                             pipeline_mode=pl.Buffered(1)))
            else:
                in_specs.append(pl.BlockSpec(w.shape, lambda i: (0, 0)))
                in_specs.append(pl.BlockSpec(b.shape, lambda i: (0, 0)))
        out_specs = pl.BlockSpec((tb, f_out), lambda i: (i, 0))
        return pl.pallas_call(
            kernel,
            out_shape=jax.ShapeDtypeStruct((b_total, f_out), out_dtype),
            grid_spec=pltpu.PrefetchScalarGridSpec(
                num_scalar_prefetch=0,
                grid=grid,
                in_specs=in_specs,
                out_specs=out_specs,
            ),
            compiler_params=pltpu.CompilerParams(
                dimension_semantics=("parallel",),
                vmem_limit_bytes=vmem_limit,
            ),
            cost_estimate=cost,
        )

    try:
        return build(True)(*args)
    except Exception:
        # Fallback if this JAX build rejects single-buffered (Buffered(1)) inputs.
        return build(False)(*args)


class VQVAEDecoderPallas:
    """Mirrors pydpm VQVAE_Decoder: Linear(z_dim->h0)+ReLU, ..., Linear(h_last->in_dim)+Sigmoid."""

    def __init__(self, in_dim, hid_dims, z_dim, key, out_dtype=jnp.bfloat16):
        self.in_dim = in_dim
        self.hid_dims = list(hid_dims)
        self.z_dim = z_dim
        self.num_layers = len(self.hid_dims)
        self.out_dtype = out_dtype

        dims_in = [z_dim] + self.hid_dims            # inputs of each Linear
        dims_out = self.hid_dims + [in_dim]          # outputs of each Linear
        self.dims_in = dims_in
        self.dims_out = dims_out

        self.weights = []   # f32 unpadded [Fin, Fout] (reference / checkpointing)
        self.biases = []    # f32 unpadded [Fout]
        self.w_pad = []     # bf16 [Fin(_pad), Fout_pad]  (MXU operands)
        self.b_pad = []     # f32  [1, Fout_pad]
        for li, (fi, fo) in enumerate(zip(dims_in, dims_out)):
            key, kw, kb = jax.random.split(key, 3)
            bound = 1.0 / math.sqrt(fi)              # matches nn.Linear default init range
            w = jax.random.uniform(kw, (fi, fo), jnp.float32, -bound, bound)
            b = jax.random.uniform(kb, (fo,), jnp.float32, -bound, bound)
            # K dim: raw z_dim for the first layer (no padded z copy needed);
            # padded-to-128 for later layers (matches padded activation width).
            fi_p = fi if li == 0 else _round_up(fi, 128)
            fo_p = _round_up(fo, 128)
            wp = jnp.zeros((fi_p, fo_p), jnp.float32).at[:fi, :fo].set(w).astype(jnp.bfloat16)
            bp = jnp.zeros((1, fo_p), jnp.float32).at[0, :fo].set(b)
            self.weights.append(w)
            self.biases.append(b)
            self.w_pad.append(wp)
            self.b_pad.append(bp)

        self.vmem_budget = _vmem_budget_bytes()
        self.layer_groups = self._partition_layers()

    def _partition_layers(self):
        """Split consecutive layers into groups whose resident weights fit the VMEM budget (v7x fallback)."""
        budget = max(4 << 20, int(0.55 * self.vmem_budget))
        groups, cur, cur_bytes = [], [], 0
        for li, (w, b) in enumerate(zip(self.w_pad, self.b_pad)):
            nbytes = w.size * w.dtype.itemsize + b.size * b.dtype.itemsize
            if cur and cur_bytes + nbytes > budget:
                groups.append(cur)
                cur, cur_bytes = [], 0
            cur.append(li)
            cur_bytes += nbytes
        if cur:
            groups.append(cur)
        return groups

    def _pick_batch_tile(self, B):
        """VMEM-aware, waste-free batch tile (multiple of 16; >=2 grid steps when B >= 32)."""
        f0 = self.dims_in[0]
        f_last_pad = self.w_pad[-1].shape[1]
        widest = max(w.shape[1] for w in self.w_pad)
        out_itemsize = jnp.dtype(self.out_dtype).itemsize
        per_row = (2 * max(f0, widest) * 2          # double-buffered bf16 input tile
                   + 2 * f_last_pad * out_itemsize  # double-buffered output tile
                   + 2 * widest * 4)                # f32 intermediates / accumulators
        max_group_w = max(
            sum(self.w_pad[li].size * 2 + self.b_pad[li].size * 4 for li in g)
            for g in self.layer_groups)
        rows_cap = (self.vmem_budget - max_group_w - (4 << 20)) // max(per_row, 1)
        rows_cap = max(16, min(1024, (rows_cap // 16) * 16))
        n_tiles = max(1, _cdiv(B, rows_cap))
        if n_tiles == 1 and B >= 32:
            n_tiles = 2            # keep both v7x TensorCores busy; harmless on v5e/v6e
        tb = _round_up(max(1, _cdiv(B, n_tiles)), 16)
        b_pad = _round_up(B, tb)   # b_pad - B < tb by construction
        return tb, b_pad

    def __call__(self, z):
        # z: f32 [B, z_dim]  ->  recon_x: out_dtype [B, in_dim]
        B = z.shape[0]
        tb, b_pad = self._pick_batch_tile(B)

        x = z.astype(jnp.bfloat16)
        if b_pad != B:
            x = jnp.pad(x, ((0, b_pad - B), (0, 0)))   # pad batch rows only

        for gi, group in enumerate(self.layer_groups):
            final = gi == len(self.layer_groups) - 1
            x = _fused_mlp_group(
                x,
                [self.w_pad[li] for li in group],
                [self.b_pad[li] for li in group],
                tb=tb,
                final_sigmoid=final,
                out_dtype=(self.out_dtype if final else jnp.bfloat16),
                vmem_budget=self.vmem_budget,
            )
        return x[:B, : self.in_dim]


if __name__ == "__main__":
    key = jax.random.PRNGKey(0)
    key, kz, kp = jax.random.split(key, 3)

    # Small shapes consistent with the module.
    batch = 2
    z_dim = 8
    hid_dims = [32, 32]
    in_dim = 16

    decoder = VQVAEDecoderPallas(in_dim=in_dim, hid_dims=hid_dims, z_dim=z_dim, key=kp)

    z = jax.random.normal(kz, (batch, z_dim), jnp.float32)
    recon_x = jax.block_until_ready(decoder(z))

    # bf16-matched pure-JAX reference (same casts / accumulation dtype as the kernel).
    x = z.astype(jnp.bfloat16)
    for li in range(decoder.num_layers):
        y = jnp.dot(x, decoder.weights[li].astype(jnp.bfloat16),
                    preferred_element_type=jnp.float32) + decoder.biases[li]
        x = jnp.maximum(y, 0.0).astype(jnp.bfloat16)
    y = jnp.dot(x, decoder.weights[-1].astype(jnp.bfloat16),
                preferred_element_type=jnp.float32) + decoder.biases[-1]
    ref_bf16 = jax.nn.sigmoid(y)

    # Full-f32 reference of the original module semantics (looser tol: bf16 weights/output).
    xf = z
    for li in range(decoder.num_layers):
        xf = jnp.maximum(xf @ decoder.weights[li] + decoder.biases[li], 0.0)
    ref_f32 = jax.nn.sigmoid(xf @ decoder.weights[-1] + decoder.biases[-1])

    assert recon_x.shape == (batch, in_dim)
    assert recon_x.dtype == decoder.out_dtype
    out_f32 = recon_x.astype(jnp.float32)
    err_bf16 = float(jnp.max(jnp.abs(out_f32 - ref_bf16)))
    err_f32 = float(jnp.max(jnp.abs(out_f32 - ref_f32)))
    # 8e-3 covers bf16 quantization of [0,1] sigmoid outputs; 3e-2 covers bf16 weights vs f32 module.
    assert err_bf16 < 8e-3, err_bf16
    assert err_f32 < 3e-2, err_f32
    print("KERNEL_OK")
</pallas_src>

<mosaic_0001>
module attributes {stable_mosaic.version = 11 : i64} {
  func.func @_fused_mlp_kernel(%arg0: i32, %arg1: memref<16x8xbf16, #tpu.memory_space<vmem>>, %arg2: memref<8x128xbf16, #tpu.memory_space<vmem>>, %arg3: memref<1x128xf32, #tpu.memory_space<vmem>>, %arg4: memref<128x128xbf16, #tpu.memory_space<vmem>>, %arg5: memref<1x128xf32, #tpu.memory_space<vmem>>, %arg6: memref<128x128xbf16, #tpu.memory_space<vmem>>, %arg7: memref<1x128xf32, #tpu.memory_space<vmem>>, %arg8: memref<16x128xbf16, #tpu.memory_space<vmem>>) attributes {dimension_semantics = [#tpu.dimension_semantics<parallel>], iteration_bounds = array<i64: 1>, scalar_prefetch = 0 : i64, scratch_operands = 0 : i64, tpu.core_type = #tpu.core_type<tc>, window_params = [{transform_indices = @transform_0, window_bounds = array<i64: 16, 8>}, {pipeline_mode = #tpu.pipeline_mode<synchronous>, transform_indices = @transform_1, window_bounds = array<i64: 8, 128>}, {pipeline_mode = #tpu.pipeline_mode<synchronous>, transform_indices = @transform_2, window_bounds = array<i64: 1, 128>}, {pipeline_mode = #tpu.pipeline_mode<synchronous>, transform_indices = @transform_3, window_bounds = array<i64: 128, 128>}, {pipeline_mode = #tpu.pipeline_mode<synchronous>, transform_indices = @transform_4, window_bounds = array<i64: 1, 128>}, {pipeline_mode = #tpu.pipeline_mode<synchronous>, transform_indices = @transform_5, window_bounds = array<i64: 128, 128>}, {pipeline_mode = #tpu.pipeline_mode<synchronous>, transform_indices = @transform_6, window_bounds = array<i64: 1, 128>}, {transform_indices = @transform_7, window_bounds = array<i64: 16, 128>}]} {
    %c0 = arith.constant 0 : index
    %c0_0 = arith.constant 0 : index
    %0 = vector.load %arg1[%c0, %c0_0] : memref<16x8xbf16, #tpu.memory_space<vmem>>, vector<16x8xbf16>
    %c0_1 = arith.constant 0 : index
    %c0_2 = arith.constant 0 : index
    %1 = vector.load %arg2[%c0_1, %c0_2] : memref<8x128xbf16, #tpu.memory_space<vmem>>, vector<8x128xbf16>
    %c0_3 = arith.constant 0 : index
    %c0_4 = arith.constant 0 : index
    %2 = vector.load %arg3[%c0_3, %c0_4] : memref<1x128xf32, #tpu.memory_space<vmem>>, vector<1x128xf32>
    %cst = arith.constant dense<0.000000e+00> : vector<16x128xf32>
    %3 = tpu.matmul %0, %1, %cst {dimension_numbers = #tpu.dot_dimension_numbers<[1], [0], [0], [1], [0, 0, 1, 1], [], []>} : vector<16x8xbf16>, vector<8x128xbf16>, vector<16x128xf32> -> vector<16x128xf32>
    %4 = vector.broadcast %2 : vector<1x128xf32> to vector<16x128xf32>
    %5 = arith.addf %3, %4 : vector<16x128xf32>
    %cst_5 = arith.constant 0.000000e+00 : f32
    %6 = vector.broadcast %cst_5 : f32 to vector<16x128xf32>
    %7 = arith.maximumf %5, %6 : vector<16x128xf32>
    %8 = arith.truncf %7 : vector<16x128xf32> to vector<16x128xbf16>
    %c0_6 = arith.constant 0 : index
    %c0_7 = arith.constant 0 : index
    %9 = vector.load %arg4[%c0_6, %c0_7] : memref<128x128xbf16, #tpu.memory_space<vmem>>, vector<128x128xbf16>
    %c0_8 = arith.constant 0 : index
    %c0_9 = arith.constant 0 : index
    %10 = vector.load %arg5[%c0_8, %c0_9] : memref<1x128xf32, #tpu.memory_space<vmem>>, vector<1x128xf32>
    %cst_10 = arith.constant dense<0.000000e+00> : vector<16x128xf32>
    %11 = tpu.matmul %8, %9, %cst_10 {dimension_numbers = #tpu.dot_dimension_numbers<[1], [0], [0], [1], [0, 0, 1, 1], [], []>} : vector<16x128xbf16>, vector<128x128xbf16>, vector<16x128xf32> -> vector<16x128xf32>
    %12 = vector.broadcast %10 : vector<1x128xf32> to vector<16x128xf32>
    %13 = arith.addf %11, %12 : vector<16x128xf32>
    %cst_11 = arith.constant 0.000000e+00 : f32
    %14 = vector.broadcast %cst_11 : f32 to vector<16x128xf32>
    %15 = arith.maximumf %13, %14 : vector<16x128xf32>
    %16 = arith.truncf %15 : vector<16x128xf32> to vector<16x128xbf16>
    %c0_12 = arith.constant 0 : index
    %c0_13 = arith.constant 0 : index
    %17 = vector.load %arg6[%c0_12, %c0_13] : memref<128x128xbf16, #tpu.memory_space<vmem>>, vector<128x128xbf16>
    %c0_14 = arith.constant 0 : index
    %c0_15 = arith.constant 0 : index
    %18 = vector.load %arg7[%c0_14, %c0_15] : memref<1x128xf32, #tpu.memory_space<vmem>>, vector<1x128xf32>
    %cst_16 = arith.constant dense<0.000000e+00> : vector<16x128xf32>
    %19 = tpu.matmul %16, %17, %cst_16 {dimension_numbers = #tpu.dot_dimension_numbers<[1], [0], [0], [1], [0, 0, 1, 1], [], []>} : vector<16x128xbf16>, vector<128x128xbf16>, vector<16x128xf32> -> vector<16x128xf32>
    %20 = vector.broadcast %18 : vector<1x128xf32> to vector<16x128xf32>
    %21 = arith.addf %19, %20 : vector<16x128xf32>
    %22 = arith.negf %21 : vector<16x128xf32>
    %23 = math.exp %22 : vector<16x128xf32>
    %cst_17 = arith.constant 1.000000e+00 : f32
    %24 = vector.broadcast %cst_17 : f32 to vector<16x128xf32>
    %25 = arith.addf %24, %23 : vector<16x128xf32>
    %26 = arith.divf %24, %25 : vector<16x128xf32>
    %27 = arith.truncf %26 : vector<16x128xf32> to vector<16x128xbf16>
    %c0_18 = arith.constant 0 : index
    %c0_19 = arith.constant 0 : index
    %28 = vector.load %arg8[%c0_18, %c0_19] : memref<16x128xbf16, #tpu.memory_space<vmem>>, vector<16x128xbf16>
    tpu.vector_store %arg8[%c0_18, %c0_19], %27 {strides = array<i32>} : memref<16x128xbf16, #tpu.memory_space<vmem>>, vector<16x128xbf16>,
    return
  }
  func.func @transform_0(%arg0: i32) -> (i32, i32) {
    %c0_i32 = arith.constant 0 : i32
    %c0_i32_0 = arith.constant 0 : i32
    return %arg0, %c0_i32 : i32, i32
  }
  func.func @transform_1(%arg0: i32) -> (i32, i32) {
    %c0_i32 = arith.constant 0 : i32
    %c0_i32_0 = arith.constant 0 : i32
    %c0_i32_1 = arith.constant 0 : i32
    return %c0_i32, %c0_i32_0 : i32, i32
  }
  func.func @transform_2(%arg0: i32) -> (i32, i32) {
    %c0_i32 = arith.constant 0 : i32
    %c0_i32_0 = arith.constant 0 : i32
    %c0_i32_1 = arith.constant 0 : i32
    return %c0_i32, %c0_i32_0 : i32, i32
  }
  func.func @transform_3(%arg0: i32) -> (i32, i32) {
    %c0_i32 = arith.constant 0 : i32
    %c0_i32_0 = arith.constant 0 : i32
    %c0_i32_1 = arith.constant 0 : i32
    return %c0_i32, %c0_i32_0 : i32, i32
  }
  func.func @transform_4(%arg0: i32) -> (i32, i32) {
    %c0_i32 = arith.constant 0 : i32
    %c0_i32_0 = arith.constant 0 : i32
    %c0_i32_1 = arith.constant 0 : i32
    return %c0_i32, %c0_i32_0 : i32, i32
  }
  func.func @transform_5(%arg0: i32) -> (i32, i32) {
    %c0_i32 = arith.constant 0 : i32
    %c0_i32_0 = arith.constant 0 : i32
    %c0_i32_1 = arith.constant 0 : i32
    return %c0_i32, %c0_i32_0 : i32, i32
  }
  func.func @transform_6(%arg0: i32) -> (i32, i32) {
    %c0_i32 = arith.constant 0 : i32
    %c0_i32_0 = arith.constant 0 : i32
    %c0_i32_1 = arith.constant 0 : i32
    return %c0_i32, %c0_i32_0 : i32, i32
  }
  func.func @transform_7(%arg0: i32) -> (i32, i32) {
    %c0_i32 = arith.constant 0 : i32
    %c0_i32_0 = arith.constant 0 : i32
    return %arg0, %c0_i32 : i32, i32
  }
}

module attributes {stable_mosaic.version = 11 : i64} {
  func.func @_fused_mlp_kernel(%arg0: i32, %arg1: memref<16x8xbf16, #tpu.memory_space<vmem>>, %arg2: memref<8x128xbf16, #tpu.memory_space<vmem>>, %arg3: memref<1x128xf32, #tpu.memory_space<vmem>>, %arg4: memref<128x128xbf16, #tpu.memory_space<vmem>>, %arg5: memref<1x128xf32, #tpu.memory_space<vmem>>, %arg6: memref<128x128xbf16, #tpu.memory_space<vmem>>, %arg7: memref<1x128xf32, #tpu.memory_space<vmem>>, %arg8: memref<16x128xbf16, #tpu.memory_space<vmem>>) attributes {dimension_semantics = [#tpu.dimension_semantics<parallel>], iteration_bounds = array<i64: 1>, scalar_prefetch = 0 : i64, scratch_operands = 0 : i64, tpu.core_type = #tpu.core_type<tc>, window_params = [{transform_indices = @transform_0, window_bounds = array<i64: 16, 8>}, {pipeline_mode = #tpu.pipeline_mode<synchronous>, transform_indices = @transform_1, window_bounds = array<i64: 8, 128>}, {pipeline_mode = #tpu.pipeline_mode<synchronous>, transform_indices = @transform_2, window_bounds = array<i64: 1, 128>}, {pipeline_mode = #tpu.pipeline_mode<synchronous>, transform_indices = @transform_3, window_bounds = array<i64: 128, 128>}, {pipeline_mode = #tpu.pipeline_mode<synchronous>, transform_indices = @transform_4, window_bounds = array<i64: 1, 128>}, {pipeline_mode = #tpu.pipeline_mode<synchronous>, transform_indices = @transform_5, window_bounds = array<i64: 128, 128>}, {pipeline_mode = #tpu.pipeline_mode<synchronous>, transform_indices = @transform_6, window_bounds = array<i64: 1, 128>}, {transform_indices = @transform_7, window_bounds = array<i64: 16, 128>}]} {
    %c0 = arith.constant 0 : index
    %c0_0 = arith.constant 0 : index
    %0 = vector.load %arg1[%c0, %c0_0] : memref<16x8xbf16, #tpu.memory_space<vmem>>, vector<16x8xbf16>
    %c0_1 = arith.constant 0 : index
    %c0_2 = arith.constant 0 : index
    %1 = vector.load %arg2[%c0_1, %c0_2] : memref<8x128xbf16, #tpu.memory_space<vmem>>, vector<8x128xbf16>
    %c0_3 = arith.constant 0 : index
    %c0_4 = arith.constant 0 : index
    %2 = vector.load %arg3[%c0_3, %c0_4] : memref<1x128xf32, #tpu.memory_space<vmem>>, vector<1x128xf32>
    %cst = arith.constant dense<0.000000e+00> : vector<16x128xf32>
    %3 = tpu.matmul %0, %1, %cst {dimension_numbers = #tpu.dot_dimension_numbers<[1], [0], [0], [1], [0, 0, 1, 1], [], []>} : vector<16x8xbf16>, vector<8x128xbf16>, vector<16x128xf32> -> vector<16x128xf32>
    %4 = vector.broadcast %2 : vector<1x128xf32> to vector<16x128xf32>
    %5 = arith.addf %3, %4 : vector<16x128xf32>
    %cst_5 = arith.constant 0.000000e+00 : f32
    %6 = vector.broadcast %cst_5 : f32 to vector<16x128xf32>
    %7 = arith.maximumf %5, %6 : vector<16x128xf32>
    %8 = arith.truncf %7 : vector<16x128xf32> to vector<16x128xbf16>
    %c0_6 = arith.constant 0 : index
    %c0_7 = arith.constant 0 : index
    %9 = vector.load %arg4[%c0_6, %c0_7] : memref<128x128xbf16, #tpu.memory_space<vmem>>, vector<128x128xbf16>
    %c0_8 = arith.constant 0 : index
    %c0_9 = arith.constant 0 : index
    %10 = vector.load %arg5[%c0_8, %c0_9] : memref<1x128xf32, #tpu.memory_space<vmem>>, vector<1x128xf32>
    %cst_10 = arith.constant dense<0.000000e+00> : vector<16x128xf32>
    %11 = tpu.matmul %8, %9, %cst_10 {dimension_numbers = #tpu.dot_dimension_numbers<[1], [0], [0], [1], [0, 0, 1, 1], [], []>} : vector<16x128xbf16>, vector<128x128xbf16>, vector<16x128xf32> -> vector<16x128xf32>
    %12 = vector.broadcast %10 : vector<1x128xf32> to vector<16x128xf32>
    %13 = arith.addf %11, %12 : vector<16x128xf32>
    %cst_11 = arith.constant 0.000000e+00 : f32
    %14 = vector.broadcast %cst_11 : f32 to vector<16x128xf32>
    %15 = arith.maximumf %13, %14 : vector<16x128xf32>
    %16 = arith.truncf %15 : vector<16x128xf32> to vector<16x128xbf16>
    %c0_12 = arith.constant 0 : index
    %c0_13 = arith.constant 0 : index
    %17 = vector.load %arg6[%c0_12, %c0_13] : memref<128x128xbf16, #tpu.memory_space<vmem>>, vector<128x128xbf16>
    %c0_14 = arith.constant 0 : index
    %c0_15 = arith.constant 0 : index
    %18 = vector.load %arg7[%c0_14, %c0_15] : memref<1x128xf32, #tpu.memory_space<vmem>>, vector<1x128xf32>
    %cst_16 = arith.constant dense<0.000000e+00> : vector<16x128xf32>
    %19 = tpu.matmul %16, %17, %cst_16 {dimension_numbers = #tpu.dot_dimension_numbers<[1], [0], [0], [1], [0, 0, 1, 1], [], []>} : vector<16x128xbf16>, vector<128x128xbf16>, vector<16x128xf32> -> vector<16x128xf32>
    %20 = vector.broadcast %18 : vector<1x128xf32> to vector<16x128xf32>
    %21 = arith.addf %19, %20 : vector<16x128xf32>
    %22 = arith.negf %21 : vector<16x128xf32>
    %23 = math.exp %22 : vector<16x128xf32>
    %cst_17 = arith.constant 1.000000e+00 : f32
    %24 = vector.broadcast %cst_17 : f32 to vector<16x128xf32>
    %25 = arith.addf %24, %23 : vector<16x128xf32>
    %26 = arith.divf %24, %25 : vector<16x128xf32>
    %27 = arith.truncf %26 : vector<16x128xf32> to vector<16x128xbf16>
    %c0_18 = arith.constant 0 : index
    %c0_19 = arith.constant 0 : index
    %28 = vector.load %arg8[%c0_18, %c0_19] : memref<16x128xbf16, #tpu.memory_space<vmem>>, vector<16x128xbf16>
    tpu.vector_store %arg8[%c0_18, %c0_19], %27 {strides = array<i32>} : memref<16x128xbf16, #tpu.memory_space<vmem>>, vector<16x128xbf16>,
    return
  }
  func.func @transform_0(%arg0: i32) -> (i32, i32) {
    %c0_i32 = arith.constant 0 : i32
    %c0_i32_0 = arith.constant 0 : i32
    return %arg0, %c0_i32 : i32, i32
  }
  func.func @transform_1(%arg0: i32) -> (i32, i32) {
    %c0_i32 = arith.constant 0 : i32
    %c0_i32_0 = arith.constant 0 : i32
    %c0_i32_1 = arith.constant 0 : i32
    return %c0_i32, %c0_i32_0 : i32, i32
  }
  func.func @transform_2(%arg0: i32) -> (i32, i32) {
    %c0_i32 = arith.constant 0 : i32
    %c0_i32_0 = arith.constant 0 : i32
    %c0_i32_1 = arith.constant 0 : i32
    return %c0_i32, %c0_i32_0 : i32, i32
  }
  func.func @transform_3(%arg0: i32) -> (i32, i32) {
    %c0_i32 = arith.constant 0 : i32
    %c0_i32_0 = arith.constant 0 : i32
    %c0_i32_1 = arith.constant 0 : i32
    return %c0_i32, %c0_i32_0 : i32, i32
  }
  func.func @transform_4(%arg0: i32) -> (i32, i32) {
    %c0_i32 = arith.constant 0 : i32
    %c0_i32_0 = arith.constant 0 : i32
    %c0_i32_1 = arith.constant 0 : i32
    return %c0_i32, %c0_i32_0 : i32, i32
  }
  func.func @transform_5(%arg0: i32) -> (i32, i32) {
    %c0_i32 = arith.constant 0 : i32
    %c0_i32_0 = arith.constant 0 : i32
    %c0_i32_1 = arith.constant 0 : i32
    return %c0_i32, %c0_i32_0 : i32, i32
  }
  func.func @transform_6(%arg0: i32) -> (i32, i32) {
    %c0_i32 = arith.constant 0 : i32
    %c0_i32_0 = arith.constant 0 : i32
    %c0_i32_1 = arith.constant 0 : i32
    return %c0_i32, %c0_i32_0 : i32, i32
  }
  func.func @transform_7(%arg0: i32) -> (i32, i32) {
    %c0_i32 = arith.constant 0 : i32
    %c0_i32_0 = arith.constant 0 : i32
    return %arg0, %c0_i32 : i32, i32
  }
}

</mosaic_0001>

<llo_original>
// kernel: tpu_custom_call.1
$region0: #{tpu_custom_call.1}
  #allocation0 [shape = 'u32[]', space=smem, size = 0x4, offset = 0x4, fixed_abs, tag = 'smem constant byte address 0x4 - core index']
  #allocation1 [shape = 'u32[144,128]{1,0:T(1,128)}', space=vmem, size = 0x12000, scoped, tag = 'internal scratch']
  %s0 = inlined_call_operand.vmem [shape: bf16[16,8], index: 0, kind: input, shape index: {}]
  %s1 = inlined_call_operand.vmem [shape: bf16[8,128], index: 1, kind: input, shape index: {}]
  %s2 = inlined_call_operand.vmem [shape: f32[1,128], index: 2, kind: input, shape index: {}]
  %s3 = inlined_call_operand.hbm [shape: bf16[128,128], index: 3, kind: input, shape index: {}]
  %s4 = inlined_call_operand.vmem [shape: f32[1,128], index: 4, kind: input, shape index: {}]
  %s5 = inlined_call_operand.hbm [shape: bf16[128,128], index: 5, kind: input, shape index: {}]
  %s6 = inlined_call_operand.vmem [shape: f32[1,128], index: 6, kind: input, shape index: {}]
  %s7 = inlined_call_operand.hbm [shape: bf16[16,128], index: 7, kind: output, shape index: {}]
  %s8 = sld [smem:[#allocation0]]
  $region46: #{tpu_custom_call.1} parent=0
    _
  %s10 = ssub.s32 1, %s8
  %s11 = scalar_select 0, %s10, %s8
  $region1: #{tpu_custom_call.1} parent=0
    #allocation2 [shape = 'u8[32768]{0}', space=vmem, size = 0x8000, scoped, tag = 'input window, operand 3, single buffered']
    #allocation3 [shape = 's32[1]{0}', space=sflag, size = 0x4, scoped, tag = 'scoped memory for tpu_custom_call.1']
    #allocation4 [shape = 's32[1]{0}', space=sflag, size = 0x4, scoped, tag = 'scoped memory for tpu_custom_call.1']
    #allocation5 [shape = 'u8[32768]{0}', space=vmem, size = 0x8000, scoped, tag = 'input window, operand 5, single buffered']
    #allocation6 [shape = 's32[1]{0}', space=sflag, size = 0x4, scoped, tag = 'scoped memory for tpu_custom_call.1']
    #allocation7 [shape = 'u8[4096]{0}', space=vmem, size = 0x1000, scoped, tag = 'output window, operand 0, single buffered']
    %12 = vsyncpa [#allocation3], 0
    %13 = vsyncpa [#allocation6], 0
    %14 = vsyncpa [#allocation4], 0
    // Predicated region
    $region2: #{tpu_custom_call.1} parent=1 // pred_check
      _
    $region3: #{tpu_custom_call.1} parent=1 // pred_check_branch
      %16 = sbr.rel (0) target = $region5
    $region4: #{tpu_custom_call.1} parent=1 // pred_region
      _
    $region5: #{tpu_custom_call.1} parent=1 // pred_fallthru
      _
    // Predicated region
    $region6: #{tpu_custom_call.1} parent=1 // pred_check
      _
    $region7: #{tpu_custom_call.1} parent=1 // pred_check_branch
      %18 = sbr.rel (0) target = $region9
    $region8: #{tpu_custom_call.1} parent=1 // pred_region
      _
    $region9: #{tpu_custom_call.1} parent=1 // pred_fallthru
      _
    // Predicated region
    $region10: #{tpu_custom_call.1} parent=1 // pred_check
      _
    $region11: #{tpu_custom_call.1} parent=1 // pred_check_branch
      %20 = sbr.rel (0) target = $region13
    $region12: #{tpu_custom_call.1} parent=1 // pred_region
      _
    $region13: #{tpu_custom_call.1} parent=1 // pred_fallthru
      _
    // Predicated region
    $region14: #{tpu_custom_call.1} parent=1 // pred_check
      _
    $region15: #{tpu_custom_call.1} parent=1 // pred_check_branch
      %22 = sbr.rel (0) target = $region17
    $region16: #{tpu_custom_call.1} parent=1 // pred_region
      %s24 = ssub.s32 1024, 1024
      %25 = vsyncadd [#allocation3], %s24
      %s26 = sshll.u32 [#allocation2], 4
      %s27 = int_to_ptr.vmem [resolvable:$true] %s26
      %32 = dma.hbm_to_vmem [thread:$0]  %s3, 1024, %s27, [#allocation3], 64, 64, 4
    $region17: #{tpu_custom_call.1} parent=1 // pred_fallthru
      _
    // Predicated region
    $region18: #{tpu_custom_call.1} parent=1 // pred_check
      _
    $region19: #{tpu_custom_call.1} parent=1 // pred_check_branch
      %34 = sbr.rel (0) target = $region21
    $region20: #{tpu_custom_call.1} parent=1 // pred_region
      _
    $region21: #{tpu_custom_call.1} parent=1 // pred_fallthru
      _
    // Predicated region
    $region22: #{tpu_custom_call.1} parent=1 // pred_check
      _
    $region23: #{tpu_custom_call.1} parent=1 // pred_check_branch
      %36 = sbr.rel (0) target = $region25
    $region24: #{tpu_custom_call.1} parent=1 // pred_region
      %s38 = ssub.s32 1024, 1024
      %39 = vsyncadd [#allocation6], %s38
      %s40 = sshll.u32 [#allocation5], 4
      %s41 = int_to_ptr.vmem [resolvable:$true] %s40
      %46 = dma.hbm_to_vmem [thread:$0]  %s5, 1024, %s41, [#allocation6], 64, 64, 4
    $region25: #{tpu_custom_call.1} parent=1 // pred_fallthru
      _
    // Predicated region
    $region26: #{tpu_custom_call.1} parent=1 // pred_check
      _
    $region27: #{tpu_custom_call.1} parent=1 // pred_check_branch
      %48 = sbr.rel (0) target = $region29
    $region28: #{tpu_custom_call.1} parent=1 // pred_region
      _
    $region29: #{tpu_custom_call.1} parent=1 // pred_fallthru
      _
    // Predicated region
    $region30: #{tpu_custom_call.1} parent=1 // pred_check
      _
    $region31: #{tpu_custom_call.1} parent=1 // pred_check_branch
      %50 = sbr.rel (0) target = $region33
    $region32: #{tpu_custom_call.1} parent=1 // pred_region
      %51 = dma.done [#allocation3], 1024
    $region33: #{tpu_custom_call.1} parent=1 // pred_fallthru
      _
    // Predicated region
    $region34: #{tpu_custom_call.1} parent=1 // pred_check
      _
    $region35: #{tpu_custom_call.1} parent=1 // pred_check_branch
      %53 = sbr.rel (0) target = $region37
    $region36: #{tpu_custom_call.1} parent=1 // pred_region
      %54 = dma.done [#allocation6], 1024
    $region37: #{tpu_custom_call.1} parent=1 // pred_fallthru
      _
    %v56 = vld [vmem:[%s0] sm:$0xf]
    %v57 = vld [vmem:[%s0 + $0x4] sm:$0xf]
    %v58 = vld [vmem:[%s1] sm:$0xf]
    %v59 = vld [vmem:[%s2] sm:$0x1]
    %v61 = vlaneseq
    %v62 = vshrl.u32 %v61, 7
    %v63 = vsub.s32 0, %v62
    %v64 = vrot.slane %v59, %v63
    %v68 = vunpack.c.l.b16 %v56
    %v69 = vunpack.c.l.b16 %v57
    %v70 = vpack.c.b16 %v69, %v68
    %vm71 = vcmask 64512
    %v73 = vsel %vm71, %v70, 0
    %vm75 = vcmask 1043456
    %v77 = vsel %vm75, %v58, 0
    %79 = vmatprep.subr.bf16.mxu0 0
    %80 = vmatpush1.bf16.msra.mxu0 0
    %81 = vmatprep.subr.bf16.mxu0 0
    %82 = vmatpush1.bf16.msra.mxu0 0
    %83 = vmatprep.subr.bf16.mxu0 0
    %84 = vmatpush1.bf16.msra.mxu0 0
    %85 = vmatprep.subr.bf16.mxu0 0
    %86 = vmatpush1.bf16.msra.mxu0 0
    %87 = vmatprep.subr.bf16.mxu0 0
    %88 = vmatpush1.bf16.msra.mxu0 0
    %89 = vmatprep.subr.bf16.mxu0 0
    %90 = vmatpush1.bf16.msra.mxu0 0
    %91 = vmatprep.subr.bf16.mxu0 0
    %92 = vmatpush1.bf16.msra.mxu0 0
    %93 = vmatprep.subr.bf16.mxu0 0
    %94 = vmatpush1.bf16.msra.mxu0 %v77
    %95 = vmatprep.subr.bf16.mxu0 0
    %96 = vmatpush2.bf16.msra.mxu0 0
    %97 = vmatprep.subr.bf16.mxu0 0
    %98 = vmatpush2.bf16.msra.mxu0 0
    %99 = vmatprep.subr.bf16.mxu0 0
    %100 = vmatpush2.bf16.msra.mxu0 0
    %101 = vmatprep.subr.bf16.mxu0 0
    %102 = vmatpush2.bf16.msra.mxu0 0
    %103 = vmatprep.subr.bf16.mxu0 0
    %104 = vmatpush2.bf16.msra.mxu0 0
    %105 = vmatprep.subr.bf16.mxu0 0
    %106 = vmatpush2.bf16.msra.mxu0 0
    %107 = vmatprep.subr.bf16.mxu0 0
    %108 = vmatpush2.bf16.msra.mxu0 0
    %109 = vmatprep.subr.bf16.mxu0 0
    %110 = vmatpush2.bf16.msra.mxu0 0
    %111 = vmatprep.mubr.bf16.mxu0 0
    %112 = vmatmul.mubr.bf16.gmra.mxu0 %v73
    %v113 = vpop.f32.mrf.mxu0
    %v114 = vadd.f32 %v64, %v113
    %v115 = vpop.f32.mrf.mxu0
    %v116 = vpop.f32.mrf.mxu0
    %v117 = vadd.f32 %v64, %v116
    %v118 = vpop.f32.mrf.mxu0
    %119 = vdwg.mxu0
    %v120 = vmax.f32 %v114, 0.0
    %v121 = vmax.f32 %v117, 0.0
    %v122 = vpack.c.bf16 %v121, %v120
    %v123 = vld [vmem:[#allocation2] sm:$0xf]
    %v124 = vld [vmem:[#allocation2 + $0x4] sm:$0xf]
    %v125 = vld [vmem:[#allocation2 + $0x8] sm:$0xf]
    %v126 = vld [vmem:[#allocation2 + $0xc] sm:$0xf]
    %v127 = vld [vmem:[#allocation2 + $0x10] sm:$0xf]
    %v128 = vld [vmem:[#allocation2 + $0x14] sm:$0xf]
    %v129 = vld [vmem:[#allocation2 + $0x18] sm:$0xf]
    %v130 = vld [vmem:[#allocation2 + $0x1c] sm:$0xf]
    %v131 = vld [vmem:[#allocation2 + $0x20] sm:$0xf]
    %v132 = vld [vmem:[#allocation2 + $0x24] sm:$0xf]
    %v133 = vld [vmem:[#allocation2 + $0x28] sm:$0xf]
    %v134 = vld [vmem:[#allocation2 + $0x2c] sm:$0xf]
    %v135 = vld [vmem:[#allocation2 + $0x30] sm:$0xf]
    %v136 = vld [vmem:[#allocation2 + $0x34] sm:$0xf]
    %v137 = vld [vmem:[#allocation2 + $0x38] sm:$0xf]
    %v138 = vld [vmem:[#allocation2 + $0x3c] sm:$0xf]
    %v139 = vld [vmem:[%s4] sm:$0x1]
    %v141 = vlaneseq
    %v142 = vshrl.u32 %v141, 7
    %v143 = vsub.s32 0, %v142
    %v144 = vrot.slane %v139, %v143
    %v162 = vunpack.c.l.b16 %v123
    %v163 = vunpack.c.l.b16 %v124
    %v164 = vunpack.c.l.b16 %v125
    %v165 = vunpack.c.l.b16 %v126
    %v166 = vunpack.c.l.b16 %v127
    %v167 = vunpack.c.l.b16 %v128
    %v168 = vunpack.c.l.b16 %v129
    %v169 = vunpack.c.l.b16 %v130
    %v170 = vunpack.c.l.b16 %v131
    %v171 = vunpack.c.l.b16 %v132
    %v172 = vunpack.c.l.b16 %v133
    %v173 = vunpack.c.l.b16 %v134
    %v174 = vunpack.c.l.b16 %v135
    %v175 = vunpack.c.l.b16 %v136
    %v176 = vunpack.c.l.b16 %v137
    %v177 = vunpack.c.l.b16 %v138
    %v178 = vpack.c.b16 %v163, %v162
    %v179 = vpack.c.b16 %v165, %v164
    %v180 = vpack.c.b16 %v167, %v166
    %v181 = vpack.c.b16 %v169, %v168
    %v182 = vpack.c.b16 %v171, %v170
    %v183 = vpack.c.b16 %v173, %v172
    %v184 = vpack.c.b16 %v175, %v174
    %v185 = vpack.c.b16 %v177, %v176
    %194 = vmatprep.subr.bf16.mxu0 0
    %195 = vmatpush1.bf16.msra.mxu0 %v185
    %196 = vmatprep.subr.bf16.mxu0 0
    %197 = vmatpush1.bf16.msra.mxu0 %v184
    %198 = vmatprep.subr.bf16.mxu0 0
    %199 = vmatpush1.bf16.msra.mxu0 %v183
    %200 = vmatprep.subr.bf16.mxu0 0
    %201 = vmatpush1.bf16.msra.mxu0 %v182
    %202 = vmatprep.subr.bf16.mxu0 0
    %203 = vmatpush1.bf16.msra.mxu0 %v181
    %204 = vmatprep.subr.bf16.mxu0 0
    %205 = vmatpush1.bf16.msra.mxu0 %v180
    %206 = vmatprep.subr.bf16.mxu0 0
    %207 = vmatpush1.bf16.msra.mxu0 %v179
    %208 = vmatprep.subr.bf16.mxu0 0
    %209 = vmatpush1.bf16.msra.mxu0 %v178
    %210 = vmatprep.subr.bf16.mxu0 0
    %211 = vmatpush2.bf16.msra.mxu0 0
    %212 = vmatprep.subr.bf16.mxu0 0
    %213 = vmatpush2.bf16.msra.mxu0 0
    %214 = vmatprep.subr.bf16.mxu0 0
    %215 = vmatpush2.bf16.msra.mxu0 0
    %216 = vmatprep.subr.bf16.mxu0 0
    %217 = vmatpush2.bf16.msra.mxu0 0
    %218 = vmatprep.subr.bf16.mxu0 0
    %219 = vmatpush2.bf16.msra.mxu0 0
    %220 = vmatprep.subr.bf16.mxu0 0
    %221 = vmatpush2.bf16.msra.mxu0 0
    %222 = vmatprep.subr.bf16.mxu0 0
    %223 = vmatpush2.bf16.msra.mxu0 0
    %224 = vmatprep.subr.bf16.mxu0 0
    %225 = vmatpush2.bf16.msra.mxu0 0
    %226 = vmatprep.mubr.bf16.mxu0 0
    %227 = vmatmul.mubr.bf16.gmra.mxu0 %v122
    %v228 = vpop.f32.mrf.mxu0
    %v229 = vadd.f32 %v144, %v228
    %v230 = vpop.f32.mrf.mxu0
    %v231 = vpop.f32.mrf.mxu0
    %v232 = vadd.f32 %v144, %v231
    %v233 = vpop.f32.mrf.mxu0
    %234 = vdwg.mxu0
    %v235 = vmax.f32 %v229, 0.0
    %v236 = vmax.f32 %v232, 0.0
    %v237 = vpack.c.bf16 %v236, %v235
    %v238 = vld [vmem:[#allocation5] sm:$0xf]
    %v239 = vld [vmem:[#allocation5 + $0x4] sm:$0xf]
    %v240 = vld [vmem:[#allocation5 + $0x8] sm:$0xf]
    %v241 = vld [vmem:[#allocation5 + $0xc] sm:$0xf]
    %v242 = vld [vmem:[#allocation5 + $0x10] sm:$0xf]
    %v243 = vld [vmem:[#allocation5 + $0x14] sm:$0xf]
    %v244 = vld [vmem:[#allocation5 + $0x18] sm:$0xf]
    %v245 = vld [vmem:[#allocation5 + $0x1c] sm:$0xf]
    %v246 = vld [vmem:[#allocation5 + $0x20] sm:$0xf]
    %v247 = vld [vmem:[#allocation5 + $0x24] sm:$0xf]
    %v248 = vld [vmem:[#allocation5 + $0x28] sm:$0xf]
    %v249 = vld [vmem:[#allocation5 + $0x2c] sm:$0xf]
    %v250 = vld [vmem:[#allocation5 + $0x30] sm:$0xf]
    %v251 = vld [vmem:[#allocation5 + $0x34] sm:$0xf]
    %v252 = vld [vmem:[#allocation5 + $0x38] sm:$0xf]
    %v253 = vld [vmem:[#allocation5 + $0x3c] sm:$0xf]
    %v254 = vld [vmem:[%s6] sm:$0x1]
    %v256 = vlaneseq
    %v257 = vshrl.u32 %v256, 7
    %v258 = vsub.s32 0, %v257
    %v259 = vrot.slane %v254, %v258
    %v277 = vunpack.c.l.b16 %v238
    %v278 = vunpack.c.l.b16 %v239
    %v279 = vunpack.c.l.b16 %v240
    %v280 = vunpack.c.l.b16 %v241
    %v281 = vunpack.c.l.b16 %v242
    %v282 = vunpack.c.l.b16 %v243
    %v283 = vunpack.c.l.b16 %v244
    %v284 = vunpack.c.l.b16 %v245
    %v285 = vunpack.c.l.b16 %v246
    %v286 = vunpack.c.l.b16 %v247
    %v287 = vunpack.c.l.b16 %v248
    %v288 = vunpack.c.l.b16 %v249
    %v289 = vunpack.c.l.b16 %v250
    %v290 = vunpack.c.l.b16 %v251
    %v291 = vunpack.c.l.b16 %v252
    %v292 = vunpack.c.l.b16 %v253
    %v293 = vpack.c.b16 %v278, %v277
    %v294 = vpack.c.b16 %v280, %v279
    %v295 = vpack.c.b16 %v282, %v281
    %v296 = vpack.c.b16 %v284, %v283
    %v297 = vpack.c.b16 %v286, %v285
    %v298 = vpack.c.b16 %v288, %v287
    %v299 = vpack.c.b16 %v290, %v289
    %v300 = vpack.c.b16 %v292, %v291
    %309 = vmatprep.subr.bf16.mxu0 0
    %310 = vmatpush1.bf16.msra.mxu0 %v300
    %311 = vmatprep.subr.bf16.mxu0 0
    %312 = vmatpush1.bf16.msra.mxu0 %v299
    %313 = vmatprep.subr.bf16.mxu0 0
    %314 = vmatpush1.bf16.msra.mxu0 %v298
    %315 = vmatprep.subr.bf16.mxu0 0
    %316 = vmatpush1.bf16.msra.mxu0 %v297
    %317 = vmatprep.subr.bf16.mxu0 0
    %318 = vmatpush1.bf16.msra.mxu0 %v296
    %319 = vmatprep.subr.bf16.mxu0 0
    %320 = vmatpush1.bf16.msra.mxu0 %v295
    %321 = vmatprep.subr.bf16.mxu0 0
    %322 = vmatpush1.bf16.msra.mxu0 %v294
    %323 = vmatprep.subr.bf16.mxu0 0
    %324 = vmatpush1.bf16.msra.mxu0 %v293
    %325 = vmatprep.subr.bf16.mxu0 0
    %326 = vmatpush2.bf16.msra.mxu0 0
    %327 = vmatprep.subr.bf16.mxu0 0
    %328 = vmatpush2.bf16.msra.mxu0 0
    %329 = vmatprep.subr.bf16.mxu0 0
    %330 = vmatpush2.bf16.msra.mxu0 0
    %331 = vmatprep.subr.bf16.mxu0 0
    %332 = vmatpush2.bf16.msra.mxu0 0
    %333 = vmatprep.subr.bf16.mxu0 0
    %334 = vmatpush2.bf16.msra.mxu0 0
    %335 = vmatprep.subr.bf16.mxu0 0
    %336 = vmatpush2.bf16.msra.mxu0 0
    %337 = vmatprep.subr.bf16.mxu0 0
    %338 = vmatpush2.bf16.msra.mxu0 0
    %339 = vmatprep.subr.bf16.mxu0 0
    %340 = vmatpush2.bf16.msra.mxu0 0
    %341 = vmatprep.mubr.bf16.mxu0 0
    %342 = vmatmul.mubr.bf16.gmra.mxu0 %v237
    %v343 = vpop.f32.mrf.mxu0
    %v344 = vadd.f32 %v259, %v343
    %v345 = vpop.f32.mrf.mxu0
    %v346 = vpop.f32.mrf.mxu0
    %v347 = vadd.f32 %v259, %v346
    %v348 = vpop.f32.mrf.mxu0
    %349 = vdwg.mxu0
    %v350 = vxor.u32 %v344, 2147483648
    %v351 = vxor.u32 %v347, 2147483648
    %v352 = vmul.f32 %v350, 1.442695
    %v353 = vpow.pop %v352
    %v354 = vmul.f32 %v351, 1.442695
    %v355 = vpow.pop %v354
    %v356 = vadd.f32 %v353, 1.0
    %v357 = vadd.f32 %v355, 1.0
    %v358 = vrcp.pop %v356
    %v359 = vmul.f32 1.0, %v358
    %v360 = vrcp.pop %v357
    %v361 = vmul.f32 1.0, %v360
    %v362 = vpack.c.bf16 %v361, %v359
    %v364 = vunpack.c.l.b16 %v362
    %v365 = vunpack.c.h.b16 %v362
    %v366 = vpack.c.b16 %v364, %v364
    %v367 = vpack.c.b16 %v365, %v365
    %370 = vst [vmem:[#allocation7] sm:$0xf] %v366
    %371 = vst [vmem:[#allocation7 + $0x4] sm:$0xf] %v367
    // Predicated region
    $region38: #{tpu_custom_call.1} parent=1 // pred_check
      _
    $region39: #{tpu_custom_call.1} parent=1 // pred_check_branch
      %373 = sbr.rel (0) target = $region41
    $region40: #{tpu_custom_call.1} parent=1 // pred_region
      %s375 = ssub.s32 128, 128
      %376 = vsyncadd [#allocation4], %s375
      %s377 = sshll.u32 [#allocation7], 4
      %s378 = int_to_ptr.vmem [resolvable:$true] %s377
      %383 = dma.vmem_to_hbm [thread:$0]  %s378, 128, %s7, [#allocation4], 64, 64, 4
    $region41: #{tpu_custom_call.1} parent=1 // pred_fallthru
      _
    // Predicated region
    $region42: #{tpu_custom_call.1} parent=1 // pred_check
      _
    $region43: #{tpu_custom_call.1} parent=1 // pred_check_branch
      %385 = sbr.rel (0) target = $region45
    $region44: #{tpu_custom_call.1} parent=1 // pred_region
      %386 = dma.done [#allocation4], 128
    $region45: #{tpu_custom_call.1} parent=1 // pred_fallthru
      _
    %387 = vsyncpa [#allocation3], 1
    %388 = vsyncpa [#allocation6], 1
    %389 = vsyncpa [#allocation4], 1

// kernel: tpu_custom_call.1
$region0: #{tpu_custom_call.1}
  #allocation0 [shape = 'u32[]', space=smem, size = 0x4, offset = 0x4, fixed_abs, tag = 'smem constant byte address 0x4 - core index']
  #allocation1 [shape = 'u32[144,128]{1,0:T(1,128)}', space=vmem, size = 0x12000, scoped, tag = 'internal scratch']
  %s0 = inlined_call_operand.vmem [shape: bf16[16,8], index: 0, kind: input, shape index: {}]
  %s1 = inlined_call_operand.vmem [shape: bf16[8,128], index: 1, kind: input, shape index: {}]
  %s2 = inlined_call_operand.vmem [shape: f32[1,128], index: 2, kind: input, shape index: {}]
  %s3 = inlined_call_operand.hbm [shape: bf16[128,128], index: 3, kind: input, shape index: {}]
  %s4 = inlined_call_operand.vmem [shape: f32[1,128], index: 4, kind: input, shape index: {}]
  %s5 = inlined_call_operand.hbm [shape: bf16[128,128], index: 5, kind: input, shape index: {}]
  %s6 = inlined_call_operand.vmem [shape: f32[1,128], index: 6, kind: input, shape index: {}]
  %s7 = inlined_call_operand.hbm [shape: bf16[16,128], index: 7, kind: output, shape index: {}]
  %s8 = sld [smem:[#allocation0]]
  $region46: #{tpu_custom_call.1} parent=0
    _
  %s10 = ssub.s32 1, %s8
  %s11 = scalar_select 0, %s10, %s8
  $region1: #{tpu_custom_call.1} parent=0
    #allocation2 [shape = 'u8[32768]{0}', space=vmem, size = 0x8000, scoped, tag = 'input window, operand 3, single buffered']
    #allocation3 [shape = 's32[1]{0}', space=sflag, size = 0x4, scoped, tag = 'scoped memory for tpu_custom_call.1']
    #allocation4 [shape = 's32[1]{0}', space=sflag, size = 0x4, scoped, tag = 'scoped memory for tpu_custom_call.1']
    #allocation5 [shape = 'u8[32768]{0}', space=vmem, size = 0x8000, scoped, tag = 'input window, operand 5, single buffered']
    #allocation6 [shape = 's32[1]{0}', space=sflag, size = 0x4, scoped, tag = 'scoped memory for tpu_custom_call.1']
    #allocation7 [shape = 'u8[4096]{0}', space=vmem, size = 0x1000, scoped, tag = 'output window, operand 0, single buffered']
    %12 = vsyncpa [#allocation3], 0
    %13 = vsyncpa [#allocation6], 0
    %14 = vsyncpa [#allocation4], 0
    // Predicated region
    $region2: #{tpu_custom_call.1} parent=1 // pred_check
      _
    $region3: #{tpu_custom_call.1} parent=1 // pred_check_branch
      %16 = sbr.rel (0) target = $region5
    $region4: #{tpu_custom_call.1} parent=1 // pred_region
      _
    $region5: #{tpu_custom_call.1} parent=1 // pred_fallthru
      _
    // Predicated region
    $region6: #{tpu_custom_call.1} parent=1 // pred_check
      _
    $region7: #{tpu_custom_call.1} parent=1 // pred_check_branch
      %18 = sbr.rel (0) target = $region9
    $region8: #{tpu_custom_call.1} parent=1 // pred_region
      _
    $region9: #{tpu_custom_call.1} parent=1 // pred_fallthru
      _
    // Predicated region
    $region10: #{tpu_custom_call.1} parent=1 // pred_check
      _
    $region11: #{tpu_custom_call.1} parent=1 // pred_check_branch
      %20 = sbr.rel (0) target = $region13
    $region12: #{tpu_custom_call.1} parent=1 // pred_region
      _
    $region13: #{tpu_custom_call.1} parent=1 // pred_fallthru
      _
    // Predicated region
    $region14: #{tpu_custom_call.1} parent=1 // pred_check
      _
    $region15: #{tpu_custom_call.1} parent=1 // pred_check_branch
      %22 = sbr.rel (0) target = $region17
    $region16: #{tpu_custom_call.1} parent=1 // pred_region
      %s24 = ssub.s32 1024, 1024
      %25 = vsyncadd [#allocation3], %s24
      %s26 = sshll.u32 [#allocation2], 4
      %s27 = int_to_ptr.vmem [resolvable:$true] %s26
      %32 = dma.hbm_to_vmem [thread:$0]  %s3, 1024, %s27, [#allocation3], 64, 64, 4
    $region17: #{tpu_custom_call.1} parent=1 // pred_fallthru
      _
    // Predicated region
    $region18: #{tpu_custom_call.1} parent=1 // pred_check
      _
    $region19: #{tpu_custom_call.1} parent=1 // pred_check_branch
      %34 = sbr.rel (0) target = $region21
    $region20: #{tpu_custom_call.1} parent=1 // pred_region
      _
    $region21: #{tpu_custom_call.1} parent=1 // pred_fallthru
      _
    // Predicated region
    $region22: #{tpu_custom_call.1} parent=1 // pred_check
      _
    $region23: #{tpu_custom_call.1} parent=1 // pred_check_branch
      %36 = sbr.rel (0) target = $region25
    $region24: #{tpu_custom_call.1} parent=1 // pred_region
      %s38 = ssub.s32 1024, 1024
      %39 = vsyncadd [#allocation6], %s38
      %s40 = sshll.u32 [#allocation5], 4
      %s41 = int_to_ptr.vmem [resolvable:$true] %s40
      %46 = dma.hbm_to_vmem [thread:$0]  %s5, 1024, %s41, [#allocation6], 64, 64, 4
    $region25: #{tpu_custom_call.1} parent=1 // pred_fallthru
      _
    // Predicated region
    $region26: #{tpu_custom_call.1} parent=1 // pred_check
      _
    $region27: #{tpu_custom_call.1} parent=1 // pred_check_branch
      %48 = sbr.rel (0) target = $region29
    $region28: #{tpu_custom_call.1} parent=1 // pred_region
      _
    $region29: #{tpu_custom_call.1} parent=1 // pred_fallthru
      _
    // Predicated region
    $region30: #{tpu_custom_call.1} parent=1 // pred_check
      _
    $region31: #{tpu_custom_call.1} parent=1 // pred_check_branch
      %50 = sbr.rel (0) target = $region33
    $region32: #{tpu_custom_call.1} parent=1 // pred_region
      %51 = dma.done [#allocation3], 1024
    $region33: #{tpu_custom_call.1} parent=1 // pred_fallthru
      _
    // Predicated region
    $region34: #{tpu_custom_call.1} parent=1 // pred_check
      _
    $region35: #{tpu_custom_call.1} parent=1 // pred_check_branch
      %53 = sbr.rel (0) target = $region37
    $region36: #{tpu_custom_call.1} parent=1 // pred_region
      %54 = dma.done [#allocation6], 1024
    $region37: #{tpu_custom_call.1} parent=1 // pred_fallthru
      _
    %v56 = vld [vmem:[%s0] sm:$0xf]
    %v57 = vld [vmem:[%s0 + $0x4] sm:$0xf]
    %v58 = vld [vmem:[%s1] sm:$0xf]
    %v59 = vld [vmem:[%s2] sm:$0x1]
    %v61 = vlaneseq
    %v62 = vshrl.u32 %v61, 7
    %v63 = vsub.s32 0, %v62
    %v64 = vrot.slane %v59, %v63
    %v68 = vunpack.c.l.b16 %v56
    %v69 = vunpack.c.l.b16 %v57
    %v70 = vpack.c.b16 %v69, %v68
    %vm71 = vcmask 64512
    %v73 = vsel %vm71, %v70, 0
    %vm75 = vcmask 1043456
    %v77 = vsel %vm75, %v58, 0
    %79 = vmatprep.subr.bf16.mxu0 0
    %80 = vmatpush1.bf16.msra.mxu0 0
    %81 = vmatprep.subr.bf16.mxu0 0
    %82 = vmatpush1.bf16.msra.mxu0 0
    %83 = vmatprep.subr.bf16.mxu0 0
    %84 = vmatpush1.bf16.msra.mxu0 0
    %85 = vmatprep.subr.bf16.mxu0 0
    %86 = vmatpush1.bf16.msra.mxu0 0
    %87 = vmatprep.subr.bf16.mxu0 0
    %88 = vmatpush1.bf16.msra.mxu0 0
    %89 = vmatprep.subr.bf16.mxu0 0
    %90 = vmatpush1.bf16.msra.mxu0 0
    %91 = vmatprep.subr.bf16.mxu0 0
    %92 = vmatpush1.bf16.msra.mxu0 0
    %93 = vmatprep.subr.bf16.mxu0 0
    %94 = vmatpush1.bf16.msra.mxu0 %v77
    %95 = vmatprep.subr.bf16.mxu0 0
    %96 = vmatpush2.bf16.msra.mxu0 0
    %97 = vmatprep.subr.bf16.mxu0 0
    %98 = vmatpush2.bf16.msra.mxu0 0
    %99 = vmatprep.subr.bf16.mxu0 0
    %100 = vmatpush2.bf16.msra.mxu0 0
    %101 = vmatprep.subr.bf16.mxu0 0
    %102 = vmatpush2.bf16.msra.mxu0 0
    %103 = vmatprep.subr.bf16.mxu0 0
    %104 = vmatpush2.bf16.msra.mxu0 0
    %105 = vmatprep.subr.bf16.mxu0 0
    %106 = vmatpush2.bf16.msra.mxu0 0
    %107 = vmatprep.subr.bf16.mxu0 0
    %108 = vmatpush2.bf16.msra.mxu0 0
    %109 = vmatprep.subr.bf16.mxu0 0
    %110 = vmatpush2.bf16.msra.mxu0 0
    %111 = vmatprep.mubr.bf16.mxu0 0
    %112 = vmatmul.mubr.bf16.gmra.mxu0 %v73
    %v113 = vpop.f32.mrf.mxu0
    %v114 = vadd.f32 %v64, %v113
    %v115 = vpop.f32.mrf.mxu0
    %v116 = vpop.f32.mrf.mxu0
    %v117 = vadd.f32 %v64, %v116
    %v118 = vpop.f32.mrf.mxu0
    %119 = vdwg.mxu0
    %v120 = vmax.f32 %v114, 0.0
    %v121 = vmax.f32 %v117, 0.0
    %v122 = vpack.c.bf16 %v121, %v120
    %v123 = vld [vmem:[#allocation2] sm:$0xf]
    %v124 = vld [vmem:[#allocation2 + $0x4] sm:$0xf]
    %v125 = vld [vmem:[#allocation2 + $0x8] sm:$0xf]
    %v126 = vld [vmem:[#allocation2 + $0xc] sm:$0xf]
    %v127 = vld [vmem:[#allocation2 + $0x10] sm:$0xf]
    %v128 = vld [vmem:[#allocation2 + $0x14] sm:$0xf]
    %v129 = vld [vmem:[#allocation2 + $0x18] sm:$0xf]
    %v130 = vld [vmem:[#allocation2 + $0x1c] sm:$0xf]
    %v131 = vld [vmem:[#allocation2 + $0x20] sm:$0xf]
    %v132 = vld [vmem:[#allocation2 + $0x24] sm:$0xf]
    %v133 = vld [vmem:[#allocation2 + $0x28] sm:$0xf]
    %v134 = vld [vmem:[#allocation2 + $0x2c] sm:$0xf]
    %v135 = vld [vmem:[#allocation2 + $0x30] sm:$0xf]
    %v136 = vld [vmem:[#allocation2 + $0x34] sm:$0xf]
    %v137 = vld [vmem:[#allocation2 + $0x38] sm:$0xf]
    %v138 = vld [vmem:[#allocation2 + $0x3c] sm:$0xf]
    %v139 = vld [vmem:[%s4] sm:$0x1]
    %v141 = vlaneseq
    %v142 = vshrl.u32 %v141, 7
    %v143 = vsub.s32 0, %v142
    %v144 = vrot.slane %v139, %v143
    %v162 = vunpack.c.l.b16 %v123
    %v163 = vunpack.c.l.b16 %v124
    %v164 = vunpack.c.l.b16 %v125
    %v165 = vunpack.c.l.b16 %v126
    %v166 = vunpack.c.l.b16 %v127
    %v167 = vunpack.c.l.b16 %v128
    %v168 = vunpack.c.l.b16 %v129
    %v169 = vunpack.c.l.b16 %v130
    %v170 = vunpack.c.l.b16 %v131
    %v171 = vunpack.c.l.b16 %v132
    %v172 = vunpack.c.l.b16 %v133
    %v173 = vunpack.c.l.b16 %v134
    %v174 = vunpack.c.l.b16 %v135
    %v175 = vunpack.c.l.b16 %v136
    %v176 = vunpack.c.l.b16 %v137
    %v177 = vunpack.c.l.b16 %v138
    %v178 = vpack.c.b16 %v163, %v162
    %v179 = vpack.c.b16 %v165, %v164
    %v180 = vpack.c.b16 %v167, %v166
    %v181 = vpack.c.b16 %v169, %v168
    %v182 = vpack.c.b16 %v171, %v170
    %v183 = vpack.c.b16 %v173, %v172
    %v184 = vpack.c.b16 %v175, %v174
    %v185 = vpack.c.b16 %v177, %v176
    %194 = vmatprep.subr.bf16.mxu0 0
    %195 = vmatpush1.bf16.msra.mxu0 %v185
    %196 = vmatprep.subr.bf16.mxu0 0
    %197 = vmatpush1.bf16.msra.mxu0 %v184
    %198 = vmatprep.subr.bf16.mxu0 0
    %199 = vmatpush1.bf16.msra.mxu0 %v183
    %200 = vmatprep.subr.bf16.mxu0 0
    %201 = vmatpush1.bf16.msra.mxu0 %v182
    %202 = vmatprep.subr.bf16.mxu0 0
    %203 = vmatpush1.bf16.msra.mxu0 %v181
    %204 = vmatprep.subr.bf16.mxu0 0
    %205 = vmatpush1.bf16.msra.mxu0 %v180
    %206 = vmatprep.subr.bf16.mxu0 0
    %207 = vmatpush1.bf16.msra.mxu0 %v179
    %208 = vmatprep.subr.bf16.mxu0 0
    %209 = vmatpush1.bf16.msra.mxu0 %v178
    %210 = vmatprep.subr.bf16.mxu0 0
    %211 = vmatpush2.bf16.msra.mxu0 0
    %212 = vmatprep.subr.bf16.mxu0 0
    %213 = vmatpush2.bf16.msra.mxu0 0
    %214 = vmatprep.subr.bf16.mxu0 0
    %215 = vmatpush2.bf16.msra.mxu0 0
    %216 = vmatprep.subr.bf16.mxu0 0
    %217 = vmatpush2.bf16.msra.mxu0 0
    %218 = vmatprep.subr.bf16.mxu0 0
    %219 = vmatpush2.bf16.msra.mxu0 0
    %220 = vmatprep.subr.bf16.mxu0 0
    %221 = vmatpush2.bf16.msra.mxu0 0
    %222 = vmatprep.subr.bf16.mxu0 0
    %223 = vmatpush2.bf16.msra.mxu0 0
    %224 = vmatprep.subr.bf16.mxu0 0
    %225 = vmatpush2.bf16.msra.mxu0 0
    %226 = vmatprep.mubr.bf16.mxu0 0
    %227 = vmatmul.mubr.bf16.gmra.mxu0 %v122
    %v228 = vpop.f32.mrf.mxu0
    %v229 = vadd.f32 %v144, %v228
    %v230 = vpop.f32.mrf.mxu0
    %v231 = vpop.f32.mrf.mxu0
    %v232 = vadd.f32 %v144, %v231
    %v233 = vpop.f32.mrf.mxu0
    %234 = vdwg.mxu0
    %v235 = vmax.f32 %v229, 0.0
    %v236 = vmax.f32 %v232, 0.0
    %v237 = vpack.c.bf16 %v236, %v235
    %v238 = vld [vmem:[#allocation5] sm:$0xf]
    %v239 = vld [vmem:[#allocation5 + $0x4] sm:$0xf]
    %v240 = vld [vmem:[#allocation5 + $0x8] sm:$0xf]
    %v241 = vld [vmem:[#allocation5 + $0xc] sm:$0xf]
    %v242 = vld [vmem:[#allocation5 + $0x10] sm:$0xf]
    %v243 = vld [vmem:[#allocation5 + $0x14] sm:$0xf]
    %v244 = vld [vmem:[#allocation5 + $0x18] sm:$0xf]
    %v245 = vld [vmem:[#allocation5 + $0x1c] sm:$0xf]
    %v246 = vld [vmem:[#allocation5 + $0x20] sm:$0xf]
    %v247 = vld [vmem:[#allocation5 + $0x24] sm:$0xf]
    %v248 = vld [vmem:[#allocation5 + $0x28] sm:$0xf]
    %v249 = vld [vmem:[#allocation5 + $0x2c] sm:$0xf]
    %v250 = vld [vmem:[#allocation5 + $0x30] sm:$0xf]
    %v251 = vld [vmem:[#allocation5 + $0x34] sm:$0xf]
    %v252 = vld [vmem:[#allocation5 + $0x38] sm:$0xf]
    %v253 = vld [vmem:[#allocation5 + $0x3c] sm:$0xf]
    %v254 = vld [vmem:[%s6] sm:$0x1]
    %v256 = vlaneseq
    %v257 = vshrl.u32 %v256, 7
    %v258 = vsub.s32 0, %v257
    %v259 = vrot.slane %v254, %v258
    %v277 = vunpack.c.l.b16 %v238
    %v278 = vunpack.c.l.b16 %v239
    %v279 = vunpack.c.l.b16 %v240
    %v280 = vunpack.c.l.b16 %v241
    %v281 = vunpack.c.l.b16 %v242
    %v282 = vunpack.c.l.b16 %v243
    %v283 = vunpack.c.l.b16 %v244
    %v284 = vunpack.c.l.b16 %v245
    %v285 = vunpack.c.l.b16 %v246
    %v286 = vunpack.c.l.b16 %v247
    %v287 = vunpack.c.l.b16 %v248
    %v288 = vunpack.c.l.b16 %v249
    %v289 = vunpack.c.l.b16 %v250
    %v290 = vunpack.c.l.b16 %v251
    %v291 = vunpack.c.l.b16 %v252
    %v292 = vunpack.c.l.b16 %v253
    %v293 = vpack.c.b16 %v278, %v277
    %v294 = vpack.c.b16 %v280, %v279
    %v295 = vpack.c.b16 %v282, %v281
    %v296 = vpack.c.b16 %v284, %v283
    %v297 = vpack.c.b16 %v286, %v285
    %v298 = vpack.c.b16 %v288, %v287
    %v299 = vpack.c.b16 %v290, %v289
    %v300 = vpack.c.b16 %v292, %v291
    %309 = vmatprep.subr.bf16.mxu0 0
    %310 = vmatpush1.bf16.msra.mxu0 %v300
    %311 = vmatprep.subr.bf16.mxu0 0
    %312 = vmatpush1.bf16.msra.mxu0 %v299
    %313 = vmatprep.subr.bf16.mxu0 0
    %314 = vmatpush1.bf16.msra.mxu0 %v298
    %315 = vmatprep.subr.bf16.mxu0 0
    %316 = vmatpush1.bf16.msra.mxu0 %v297
    %317 = vmatprep.subr.bf16.mxu0 0
    %318 = vmatpush1.bf16.msra.mxu0 %v296
    %319 = vmatprep.subr.bf16.mxu0 0
    %320 = vmatpush1.bf16.msra.mxu0 %v295
    %321 = vmatprep.subr.bf16.mxu0 0
    %322 = vmatpush1.bf16.msra.mxu0 %v294
    %323 = vmatprep.subr.bf16.mxu0 0
    %324 = vmatpush1.bf16.msra.mxu0 %v293
    %325 = vmatprep.subr.bf16.mxu0 0
    %326 = vmatpush2.bf16.msra.mxu0 0
    %327 = vmatprep.subr.bf16.mxu0 0
    %328 = vmatpush2.bf16.msra.mxu0 0
    %329 = vmatprep.subr.bf16.mxu0 0
    %330 = vmatpush2.bf16.msra.mxu0 0
    %331 = vmatprep.subr.bf16.mxu0 0
    %332 = vmatpush2.bf16.msra.mxu0 0
    %333 = vmatprep.subr.bf16.mxu0 0
    %334 = vmatpush2.bf16.msra.mxu0 0
    %335 = vmatprep.subr.bf16.mxu0 0
    %336 = vmatpush2.bf16.msra.mxu0 0
    %337 = vmatprep.subr.bf16.mxu0 0
    %338 = vmatpush2.bf16.msra.mxu0 0
    %339 = vmatprep.subr.bf16.mxu0 0
    %340 = vmatpush2.bf16.msra.mxu0 0
    %341 = vmatprep.mubr.bf16.mxu0 0
    %342 = vmatmul.mubr.bf16.gmra.mxu0 %v237
    %v343 = vpop.f32.mrf.mxu0
    %v344 = vadd.f32 %v259, %v343
    %v345 = vpop.f32.mrf.mxu0
    %v346 = vpop.f32.mrf.mxu0
    %v347 = vadd.f32 %v259, %v346
    %v348 = vpop.f32.mrf.mxu0
    %349 = vdwg.mxu0
    %v350 = vxor.u32 %v344, 2147483648
    %v351 = vxor.u32 %v347, 2147483648
    %v352 = vmul.f32 %v350, 1.442695
    %v353 = vpow.pop %v352
    %v354 = vmul.f32 %v351, 1.442695
    %v355 = vpow.pop %v354
    %v356 = vadd.f32 %v353, 1.0
    %v357 = vadd.f32 %v355, 1.0
    %v358 = vrcp.pop %v356
    %v359 = vmul.f32 1.0, %v358
    %v360 = vrcp.pop %v357
    %v361 = vmul.f32 1.0, %v360
    %v362 = vpack.c.bf16 %v361, %v359
    %v364 = vunpack.c.l.b16 %v362
    %v365 = vunpack.c.h.b16 %v362
    %v366 = vpack.c.b16 %v364, %v364
    %v367 = vpack.c.b16 %v365, %v365
    %370 = vst [vmem:[#allocation7] sm:$0xf] %v366
    %371 = vst [vmem:[#allocation7 + $0x4] sm:$0xf] %v367
    // Predicated region
    $region38: #{tpu_custom_call.1} parent=1 // pred_check
      _
    $region39: #{tpu_custom_call.1} parent=1 // pred_check_branch
      %373 = sbr.rel (0) target = $region41
    $region40: #{tpu_custom_call.1} parent=1 // pred_region
      %s375 = ssub.s32 128, 128
      %376 = vsyncadd [#allocation4], %s375
      %s377 = sshll.u32 [#allocation7], 4
      %s378 = int_to_ptr.vmem [resolvable:$true] %s377
      %383 = dma.vmem_to_hbm [thread:$0]  %s378, 128, %s7, [#allocation4], 64, 64, 4
    $region41: #{tpu_custom_call.1} parent=1 // pred_fallthru
      _
    // Predicated region
    $region42: #{tpu_custom_call.1} parent=1 // pred_check
      _
    $region43: #{tpu_custom_call.1} parent=1 // pred_check_branch
      %385 = sbr.rel (0) target = $region45
    $region44: #{tpu_custom_call.1} parent=1 // pred_region
      %386 = dma.done [#allocation4], 128
    $region45: #{tpu_custom_call.1} parent=1 // pred_fallthru
      _
    %387 = vsyncpa [#allocation3], 1
    %388 = vsyncpa [#allocation6], 1
    %389 = vsyncpa [#allocation4], 1

</llo_original>
